<compile_context>
chip_gen: v7x
topology: tpu7x:2x2x1
jax: 0.10.0
libtpu: 0.0.40
codegen_flags: <defaults>
</compile_context>

<pallas_src>
import jax
import jax.numpy as jnp
from jax.experimental import pallas as pl
from jax.experimental.pallas import tpu as pltpu

# Output-slab lane assignment.
Y0_LANE, Y1_LANE, TREAT_LANE = 0, 1, 2
OUT_LANES = 128
BATCH_GRANULE = 16            # bf16 sublane packing granule


def _round_up(n, m):
    return ((n + m - 1) // m) * m


# ----------------------------- Pallas kernel ------------------------------ #
def dragonnet_kernel(
    x_ref,                                  # (TB, input_dim) f32 (cast in-kernel)
    w1_ref, w2_ref, w3_ref,                 # shared layers, bf16
    wh1t_ref,                               # (SH, 2*OH + 128) fused head-1 + treat
    wh2_ref,                                # (2*OH, 2*OH) block-diag head-2
    wfin_ref,                               # (2*OH, 128) final proj (lanes 0/1)
    bias_ref,                               # (8, BMAX) f32 bias slab
    out_ref,                                # (TB, 128) bf16 output slab
):
    f32 = jnp.float32
    bf16 = w1_ref.dtype
    sh = w1_ref.shape[1]
    oh2 = wh2_ref.shape[0]
    nfused = wh1t_ref.shape[1]              # oh2 + 128
    nout = out_ref.shape[1]

    relu = lambda v: jnp.maximum(v, 0.0)

    biases = bias_ref[...]
    b1 = biases[0:1, :sh]
    b2 = biases[1:2, :sh]
    b3 = biases[2:3, :sh]
    bh1t = biases[3:4, :nfused]             # head-1 biases + treat bias at oh2+TREAT_LANE
    bh2 = biases[4:5, :oh2]
    bfin = biases[5:6, :nout]               # col0 = b03, col1 = b13

    # cast x to bf16 in-kernel (no separate XLA pad/cast pass over x)
    x = x_ref[...].astype(bf16)

    # shared representation: 3 x (Linear + ReLU), bf16 matmuls, f32 accum
    z = relu(jnp.dot(x, w1_ref[...], preferred_element_type=f32) + b1)
    z = relu(jnp.dot(z.astype(bf16), w2_ref[...], preferred_element_type=f32) + b2)
    z = relu(jnp.dot(z.astype(bf16), w3_ref[...], preferred_element_type=f32) + b3)
    zb = z.astype(bf16)

    # fused (y0 | y1 head layer-1 | treatment projection): one wide matmul
    a = jnp.dot(zb, wh1t_ref[...], preferred_element_type=f32) + bh1t
    h = relu(a[:, :oh2])                    # outcome-head hidden (no ReLU on treat)
    t_logit = a[:, oh2:]                    # (TB, 128); lane TREAT_LANE holds the logit
    t_sig = jax.nn.sigmoid(t_logit)

    # fused y0 / y1 outcome heads, layer 2 + final projection
    h = relu(jnp.dot(h.astype(bf16), wh2_ref[...], preferred_element_type=f32) + bh2)
    fin = jnp.dot(h.astype(bf16), wfin_ref[...], preferred_element_type=f32) + bfin
    # fin: lane 0 = y0, lane 1 = y1, other lanes 0

    lane = jax.lax.broadcasted_iota(jnp.int32, fin.shape, 1)
    out_ref[...] = jnp.where(lane == TREAT_LANE, t_sig, fin).astype(out_ref.dtype)


# --------------------------- parameter packing ----------------------------- #
def pack_params(params, dtype=jnp.bfloat16):
    """Pack the 22 PyTorch-layout params into 6 bf16 weights + 1 f32 bias slab."""
    (w1, b1, w2, b2, w3, b3, wt, bt,
     w01, b01, w02, b02, w03, b03,
     w11, b11, w12, b12, w13, b13,
     weps, beps) = params

    sh = w1.shape[1]
    oh = w01.shape[1]
    oh2 = 2 * oh
    nfused = oh2 + OUT_LANES

    # fused first outcome layer + treatment projection:
    #   cols [0, oh)         -> y0 head layer-1
    #   cols [oh, 2*oh)      -> y1 head layer-1
    #   cols [2*oh, 2*oh+128)-> lane-padded treatment weight (col TREAT_LANE)
    wh1t = jnp.zeros((sh, nfused), jnp.float32)
    wh1t = wh1t.at[:, :oh].set(w01).at[:, oh:oh2].set(w11)
    wh1t = wh1t.at[:, oh2 + TREAT_LANE:oh2 + TREAT_LANE + 1].set(wt)

    # second outcome layer: block-diagonal (y0 | y1)
    wh2 = jnp.zeros((oh2, oh2), jnp.float32)
    wh2 = wh2.at[:oh, :oh].set(w02).at[oh:, oh:].set(w12)

    # final projection -> lanes 0/1 of the output slab
    wfin = jnp.zeros((oh2, OUT_LANES), jnp.float32)
    wfin = wfin.at[:oh, Y0_LANE:Y0_LANE + 1].set(w03)
    wfin = wfin.at[oh:, Y1_LANE:Y1_LANE + 1].set(w13)

    # bias slab: one (8, BMAX) f32 array
    bmax = _round_up(max(sh, nfused, OUT_LANES), 128)
    biases = jnp.zeros((8, bmax), jnp.float32)
    biases = biases.at[0, :sh].set(b1[0])
    biases = biases.at[1, :sh].set(b2[0])
    biases = biases.at[2, :sh].set(b3[0])
    biases = biases.at[3, :oh].set(b01[0])
    biases = biases.at[3, oh:oh2].set(b11[0])
    biases = biases.at[3, oh2 + TREAT_LANE].set(bt[0, 0])
    biases = biases.at[4, :oh].set(b02[0])
    biases = biases.at[4, oh:oh2].set(b12[0])
    biases = biases.at[5, Y0_LANE].set(b03[0, 0])
    biases = biases.at[5, Y1_LANE].set(b13[0, 0])

    cast = lambda w: w.astype(dtype)
    weights = (cast(w1), cast(w2), cast(w3), cast(wh1t), cast(wh2), cast(wfin))
    return weights, biases


# ------------------------------ host wrapper ------------------------------ #
def dragonnet_forward(x, params, *, tb=1024):
    """DragonNet forward as one batch-tiled Pallas call.

    x: (B, input_dim) float32
    Returns (y0, y1, t_pred, eps), each (B, 1) float32.
    """
    B, input_dim = x.shape

    weights, biases = pack_params(params)
    packed = weights + (biases,)

    # Batch tile: as large as possible to amortize per-grid-step overhead,
    # but keep >= 2 grid steps when the batch allows it (v7x megacore).
    b_ceil = _round_up(B, BATCH_GRANULE)
    half = _round_up((b_ceil + 1) // 2, BATCH_GRANULE)
    tb = max(BATCH_GRANULE, min(tb, half))
    b_pad = _round_up(B, tb)
    grid = (b_pad // tb,)

    # Only pad the batch dim (no feature pad, no dtype cast) and only if ragged.
    if b_pad != B:
        x_in = jnp.zeros((b_pad, input_dim), x.dtype).at[:B].set(x)
    else:
        x_in = x

    in_specs = [pl.BlockSpec((tb, input_dim), lambda i: (i, 0))]
    in_specs += [pl.BlockSpec(p.shape, lambda i: (0, 0)) for p in packed]

    out = pl.pallas_call(
        dragonnet_kernel,
        out_shape=jax.ShapeDtypeStruct((b_pad, OUT_LANES), jnp.bfloat16),
        grid_spec=pltpu.PrefetchScalarGridSpec(
            num_scalar_prefetch=0,
            grid=grid,
            in_specs=in_specs,
            out_specs=pl.BlockSpec((tb, OUT_LANES), lambda i: (i, 0)),
        ),
        compiler_params=pltpu.CompilerParams(
            dimension_semantics=("parallel",),
            vmem_limit_bytes=32 << 20,      # safe on v7x (64 MiB physical)
        ),
    )(x_in, *packed)

    y0 = out[:B, Y0_LANE:Y0_LANE + 1].astype(jnp.float32)
    y1 = out[:B, Y1_LANE:Y1_LANE + 1].astype(jnp.float32)
    t_pred = out[:B, TREAT_LANE:TREAT_LANE + 1].astype(jnp.float32)

    # eps = Linear(1,1)(ones) = weps * 1 + beps: batch-constant, exact in f32.
    weps, beps = params[-2], params[-1]
    eps = jnp.full((B, 1), (weps + beps)[0, 0], dtype=jnp.float32)
    return y0, y1, t_pred, eps


# -------------------------- deterministic params --------------------------- #
def init_params(key, input_dim, shared_hidden, outcome_hidden):
    """Synthetic parameters; Linear weights stored (in, out) = W_torch.T."""
    keys = jax.random.split(key, 32)
    k = iter(keys)

    def lin(kin, in_f, out_f, scale=0.05):
        w = scale * jax.random.normal(kin, (in_f, out_f), dtype=jnp.float32)
        b = jnp.zeros((1, out_f), dtype=jnp.float32)
        return w, b

    w1, b1 = lin(next(k), input_dim, shared_hidden)
    w2, b2 = lin(next(k), shared_hidden, shared_hidden)
    w3, b3 = lin(next(k), shared_hidden, shared_hidden)
    wt, bt = lin(next(k), shared_hidden, 1)

    w01, b01 = lin(next(k), shared_hidden, outcome_hidden)
    w02, b02 = lin(next(k), outcome_hidden, outcome_hidden)
    w03, b03 = lin(next(k), outcome_hidden, 1)

    w11, b11 = lin(next(k), shared_hidden, outcome_hidden)
    w12, b12 = lin(next(k), outcome_hidden, outcome_hidden)
    w13, b13 = lin(next(k), outcome_hidden, 1)

    # epsilon: nn.Linear(1, 1) with xavier_normal_ weight init
    weps = jax.random.normal(next(k), (1, 1), dtype=jnp.float32)
    beps = 0.1 * jax.random.normal(next(k), (1, 1), dtype=jnp.float32)

    return (w1, b1, w2, b2, w3, b3, wt, bt,
            w01, b01, w02, b02, w03, b03,
            w11, b11, w12, b12, w13, b13,
            weps, beps)


# --------------------------- pure-JAX reference ---------------------------- #
def dragonnet_reference(x, params):
    (w1, b1, w2, b2, w3, b3, wt, bt,
     w01, b01, w02, b02, w03, b03,
     w11, b11, w12, b12, w13, b13,
     weps, beps) = params
    relu = lambda v: jnp.maximum(v, 0.0)
    z = relu(x @ w1 + b1)
    z = relu(z @ w2 + b2)
    z = relu(z @ w3 + b3)
    t = jax.nn.sigmoid(z @ wt + bt)
    h0 = relu(z @ w01 + b01)
    h0 = relu(h0 @ w02 + b02)
    y0 = h0 @ w03 + b03
    h1 = relu(z @ w11 + b11)
    h1 = relu(h1 @ w12 + b12)
    y1 = h1 @ w13 + b13
    eps = jnp.ones((x.shape[0], 1), jnp.float32) @ weps + beps
    return y0, y1, t, eps


# ---------------------------------- main ----------------------------------- #
if __name__ == "__main__":
    # small shapes consistent with the module (defaults are 512 / 256 hidden)
    B, INPUT_DIM, SHARED_HIDDEN, OUTCOME_HIDDEN = 8, 32, 128, 128

    key = jax.random.PRNGKey(0)
    kx, kp = jax.random.split(key)
    x = jax.random.normal(kx, (B, INPUT_DIM), dtype=jnp.float32)
    params = init_params(kp, INPUT_DIM, SHARED_HIDDEN, OUTCOME_HIDDEN)

    y0, y1, t_pred, eps = dragonnet_forward(x, params)
    jax.block_until_ready((y0, y1, t_pred, eps))

    # sanity check against pure-JAX f32 reference
    # (bf16 matmuls + bf16 output slab -> ~1e-2 precision contract; eps exact)
    ry0, ry1, rt, reps = dragonnet_reference(x, params)
    assert y0.shape == (B, 1) and y1.shape == (B, 1)
    assert t_pred.shape == (B, 1) and eps.shape == (B, 1)
    assert jnp.allclose(y0, ry0, atol=2e-2, rtol=2e-2)
    assert jnp.allclose(y1, ry1, atol=2e-2, rtol=2e-2)
    assert jnp.allclose(t_pred, rt, atol=2e-2, rtol=2e-2)
    assert jnp.allclose(eps, reps, atol=1e-6, rtol=1e-6)

    print("KERNEL_OK")
</pallas_src>

<mosaic_0001>
module attributes {stable_mosaic.version = 11 : i64} {
  func.func @dragonnet_kernel(%arg0: i32, %arg1: memref<16x32xf32, #tpu.memory_space<vmem>>, %arg2: memref<32x128xbf16, #tpu.memory_space<vmem>>, %arg3: memref<128x128xbf16, #tpu.memory_space<vmem>>, %arg4: memref<128x128xbf16, #tpu.memory_space<vmem>>, %arg5: memref<128x384xbf16, #tpu.memory_space<vmem>>, %arg6: memref<256x256xbf16, #tpu.memory_space<vmem>>, %arg7: memref<256x128xbf16, #tpu.memory_space<vmem>>, %arg8: memref<8x384xf32, #tpu.memory_space<vmem>>, %arg9: memref<16x128xbf16, #tpu.memory_space<vmem>>) attributes {dimension_semantics = [#tpu.dimension_semantics<parallel>], iteration_bounds = array<i64: 1>, scalar_prefetch = 0 : i64, scratch_operands = 0 : i64, tpu.core_type = #tpu.core_type<tc>, window_params = [{transform_indices = @transform_0, window_bounds = array<i64: 16, 32>}, {pipeline_mode = #tpu.pipeline_mode<synchronous>, transform_indices = @transform_1, window_bounds = array<i64: 32, 128>}, {pipeline_mode = #tpu.pipeline_mode<synchronous>, transform_indices = @transform_2, window_bounds = array<i64: 128, 128>}, {pipeline_mode = #tpu.pipeline_mode<synchronous>, transform_indices = @transform_3, window_bounds = array<i64: 128, 128>}, {pipeline_mode = #tpu.pipeline_mode<synchronous>, transform_indices = @transform_4, window_bounds = array<i64: 128, 384>}, {pipeline_mode = #tpu.pipeline_mode<synchronous>, transform_indices = @transform_5, window_bounds = array<i64: 256, 256>}, {pipeline_mode = #tpu.pipeline_mode<synchronous>, transform_indices = @transform_6, window_bounds = array<i64: 256, 128>}, {pipeline_mode = #tpu.pipeline_mode<synchronous>, transform_indices = @transform_7, window_bounds = array<i64: 8, 384>}, {transform_indices = @transform_8, window_bounds = array<i64: 16, 128>}]} {
    %c0 = arith.constant 0 : index
    %c0_0 = arith.constant 0 : index
    %0 = vector.load %arg8[%c0, %c0_0] : memref<8x384xf32, #tpu.memory_space<vmem>>, vector<8x384xf32>
    %1 = vector.extract_strided_slice %0 {offsets = [0, 0], sizes = [1, 128], strides = [1, 1]} : vector<8x384xf32> to vector<1x128xf32>
    %2 = vector.extract_strided_slice %0 {offsets = [1, 0], sizes = [1, 128], strides = [1, 1]} : vector<8x384xf32> to vector<1x128xf32>
    %3 = vector.extract_strided_slice %0 {offsets = [2, 0], sizes = [1, 128], strides = [1, 1]} : vector<8x384xf32> to vector<1x128xf32>
    %4 = vector.extract_strided_slice %0 {offsets = [3, 0], sizes = [1, 384], strides = [1, 1]} : vector<8x384xf32> to vector<1x384xf32>
    %5 = vector.extract_strided_slice %0 {offsets = [4, 0], sizes = [1, 256], strides = [1, 1]} : vector<8x384xf32> to vector<1x256xf32>
    %6 = vector.extract_strided_slice %0 {offsets = [5, 0], sizes = [1, 128], strides = [1, 1]} : vector<8x384xf32> to vector<1x128xf32>
    %c0_1 = arith.constant 0 : index
    %c0_2 = arith.constant 0 : index
    %7 = vector.load %arg1[%c0_1, %c0_2] : memref<16x32xf32, #tpu.memory_space<vmem>>, vector<16x32xf32>
    %8 = arith.truncf %7 : vector<16x32xf32> to vector<16x32xbf16>
    %c0_3 = arith.constant 0 : index
    %c0_4 = arith.constant 0 : index
    %9 = vector.load %arg2[%c0_3, %c0_4] : memref<32x128xbf16, #tpu.memory_space<vmem>>, vector<32x128xbf16>
    %cst = arith.constant dense<0.000000e+00> : vector<16x128xf32>
    %10 = tpu.matmul %8, %9, %cst {dimension_numbers = #tpu.dot_dimension_numbers<[1], [0], [0], [1], [0, 0, 1, 1], [], []>} : vector<16x32xbf16>, vector<32x128xbf16>, vector<16x128xf32> -> vector<16x128xf32>
    %11 = vector.broadcast %1 : vector<1x128xf32> to vector<16x128xf32>
    %12 = arith.addf %10, %11 : vector<16x128xf32>
    %cst_5 = arith.constant 0.000000e+00 : f32
    %13 = vector.broadcast %cst_5 : f32 to vector<16x128xf32>
    %14 = arith.maximumf %12, %13 : vector<16x128xf32>
    %15 = arith.truncf %14 : vector<16x128xf32> to vector<16x128xbf16>
    %c0_6 = arith.constant 0 : index
    %c0_7 = arith.constant 0 : index
    %16 = vector.load %arg3[%c0_6, %c0_7] : memref<128x128xbf16, #tpu.memory_space<vmem>>, vector<128x128xbf16>
    %cst_8 = arith.constant dense<0.000000e+00> : vector<16x128xf32>
    %17 = tpu.matmul %15, %16, %cst_8 {dimension_numbers = #tpu.dot_dimension_numbers<[1], [0], [0], [1], [0, 0, 1, 1], [], []>} : vector<16x128xbf16>, vector<128x128xbf16>, vector<16x128xf32> -> vector<16x128xf32>
    %18 = vector.broadcast %2 : vector<1x128xf32> to vector<16x128xf32>
    %19 = arith.addf %17, %18 : vector<16x128xf32>
    %cst_9 = arith.constant 0.000000e+00 : f32
    %20 = vector.broadcast %cst_9 : f32 to vector<16x128xf32>
    %21 = arith.maximumf %19, %20 : vector<16x128xf32>
    %22 = arith.truncf %21 : vector<16x128xf32> to vector<16x128xbf16>
    %c0_10 = arith.constant 0 : index
    %c0_11 = arith.constant 0 : index
    %23 = vector.load %arg4[%c0_10, %c0_11] : memref<128x128xbf16, #tpu.memory_space<vmem>>, vector<128x128xbf16>
    %cst_12 = arith.constant dense<0.000000e+00> : vector<16x128xf32>
    %24 = tpu.matmul %22, %23, %cst_12 {dimension_numbers = #tpu.dot_dimension_numbers<[1], [0], [0], [1], [0, 0, 1, 1], [], []>} : vector<16x128xbf16>, vector<128x128xbf16>, vector<16x128xf32> -> vector<16x128xf32>
    %25 = vector.broadcast %3 : vector<1x128xf32> to vector<16x128xf32>
    %26 = arith.addf %24, %25 : vector<16x128xf32>
    %cst_13 = arith.constant 0.000000e+00 : f32
    %27 = vector.broadcast %cst_13 : f32 to vector<16x128xf32>
    %28 = arith.maximumf %26, %27 : vector<16x128xf32>
    %29 = arith.truncf %28 : vector<16x128xf32> to vector<16x128xbf16>
    %c0_14 = arith.constant 0 : index
    %c0_15 = arith.constant 0 : index
    %30 = vector.load %arg5[%c0_14, %c0_15] : memref<128x384xbf16, #tpu.memory_space<vmem>>, vector<128x384xbf16>
    %cst_16 = arith.constant dense<0.000000e+00> : vector<16x384xf32>
    %31 = tpu.matmul %29, %30, %cst_16 {dimension_numbers = #tpu.dot_dimension_numbers<[1], [0], [0], [1], [0, 0, 1, 1], [], []>} : vector<16x128xbf16>, vector<128x384xbf16>, vector<16x384xf32> -> vector<16x384xf32>
    %32 = vector.broadcast %4 : vector<1x384xf32> to vector<16x384xf32>
    %33 = arith.addf %31, %32 : vector<16x384xf32>
    %34 = vector.extract_strided_slice %33 {offsets = [0, 0], sizes = [16, 256], strides = [1, 1]} : vector<16x384xf32> to vector<16x256xf32>
    %cst_17 = arith.constant 0.000000e+00 : f32
    %35 = vector.broadcast %cst_17 : f32 to vector<16x256xf32>
    %36 = arith.maximumf %34, %35 : vector<16x256xf32>
    %37 = vector.extract_strided_slice %33 {offsets = [0, 256], sizes = [16, 128], strides = [1, 1]} : vector<16x384xf32> to vector<16x128xf32>
    %38 = arith.negf %37 : vector<16x128xf32>
    %39 = math.exp %38 : vector<16x128xf32>
    %cst_18 = arith.constant 1.000000e+00 : f32
    %40 = vector.broadcast %cst_18 : f32 to vector<16x128xf32>
    %41 = arith.addf %40, %39 : vector<16x128xf32>
    %42 = arith.divf %40, %41 : vector<16x128xf32>
    %43 = arith.truncf %36 : vector<16x256xf32> to vector<16x256xbf16>
    %c0_19 = arith.constant 0 : index
    %c0_20 = arith.constant 0 : index
    %44 = vector.load %arg6[%c0_19, %c0_20] : memref<256x256xbf16, #tpu.memory_space<vmem>>, vector<256x256xbf16>
    %cst_21 = arith.constant dense<0.000000e+00> : vector<16x256xf32>
    %45 = tpu.matmul %43, %44, %cst_21 {dimension_numbers = #tpu.dot_dimension_numbers<[1], [0], [0], [1], [0, 0, 1, 1], [], []>} : vector<16x256xbf16>, vector<256x256xbf16>, vector<16x256xf32> -> vector<16x256xf32>
    %46 = vector.broadcast %5 : vector<1x256xf32> to vector<16x256xf32>
    %47 = arith.addf %45, %46 : vector<16x256xf32>
    %cst_22 = arith.constant 0.000000e+00 : f32
    %48 = vector.broadcast %cst_22 : f32 to vector<16x256xf32>
    %49 = arith.maximumf %47, %48 : vector<16x256xf32>
    %50 = arith.truncf %49 : vector<16x256xf32> to vector<16x256xbf16>
    %c0_23 = arith.constant 0 : index
    %c0_24 = arith.constant 0 : index
    %51 = vector.load %arg7[%c0_23, %c0_24] : memref<256x128xbf16, #tpu.memory_space<vmem>>, vector<256x128xbf16>
    %cst_25 = arith.constant dense<0.000000e+00> : vector<16x128xf32>
    %52 = tpu.matmul %50, %51, %cst_25 {dimension_numbers = #tpu.dot_dimension_numbers<[1], [0], [0], [1], [0, 0, 1, 1], [], []>} : vector<16x256xbf16>, vector<256x128xbf16>, vector<16x128xf32> -> vector<16x128xf32>
    %53 = vector.broadcast %6 : vector<1x128xf32> to vector<16x128xf32>
    %54 = arith.addf %52, %53 : vector<16x128xf32>
    %55 = tpu.iota {dimensions = array<i32: 1>} : vector<16x128xi32>
    %c2_i32 = arith.constant 2 : i32
    %56 = vector.broadcast %c2_i32 : i32 to vector<16x128xi32>
    %57 = arith.cmpi eq, %55, %56 : vector<16x128xi32>
    %58 = arith.select %57, %42, %54 : vector<16x128xi1>, vector<16x128xf32>
    %59 = arith.truncf %58 : vector<16x128xf32> to vector<16x128xbf16>
    %c0_26 = arith.constant 0 : index
    %c0_27 = arith.constant 0 : index
    %60 = vector.load %arg9[%c0_26, %c0_27] : memref<16x128xbf16, #tpu.memory_space<vmem>>, vector<16x128xbf16>
    tpu.vector_store %arg9[%c0_26, %c0_27], %59 {strides = array<i32>} : memref<16x128xbf16, #tpu.memory_space<vmem>>, vector<16x128xbf16>,
    return
  }
  func.func @transform_0(%arg0: i32) -> (i32, i32) {
    %c0_i32 = arith.constant 0 : i32
    %c0_i32_0 = arith.constant 0 : i32
    return %arg0, %c0_i32 : i32, i32
  }
  func.func @transform_1(%arg0: i32) -> (i32, i32) {
    %c0_i32 = arith.constant 0 : i32
    %c0_i32_0 = arith.constant 0 : i32
    %c0_i32_1 = arith.constant 0 : i32
    return %c0_i32, %c0_i32_0 : i32, i32
  }
  func.func @transform_2(%arg0: i32) -> (i32, i32) {
    %c0_i32 = arith.constant 0 : i32
    %c0_i32_0 = arith.constant 0 : i32
    %c0_i32_1 = arith.constant 0 : i32
    return %c0_i32, %c0_i32_0 : i32, i32
  }
  func.func @transform_3(%arg0: i32) -> (i32, i32) {
    %c0_i32 = arith.constant 0 : i32
    %c0_i32_0 = arith.constant 0 : i32
    %c0_i32_1 = arith.constant 0 : i32
    return %c0_i32, %c0_i32_0 : i32, i32
  }
  func.func @transform_4(%arg0: i32) -> (i32, i32) {
    %c0_i32 = arith.constant 0 : i32
    %c0_i32_0 = arith.constant 0 : i32
    %c0_i32_1 = arith.constant 0 : i32
    return %c0_i32, %c0_i32_0 : i32, i32
  }
  func.func @transform_5(%arg0: i32) -> (i32, i32) {
    %c0_i32 = arith.constant 0 : i32
    %c0_i32_0 = arith.constant 0 : i32
    %c0_i32_1 = arith.constant 0 : i32
    return %c0_i32, %c0_i32_0 : i32, i32
  }
  func.func @transform_6(%arg0: i32) -> (i32, i32) {
    %c0_i32 = arith.constant 0 : i32
    %c0_i32_0 = arith.constant 0 : i32
    %c0_i32_1 = arith.constant 0 : i32
    return %c0_i32, %c0_i32_0 : i32, i32
  }
  func.func @transform_7(%arg0: i32) -> (i32, i32) {
    %c0_i32 = arith.constant 0 : i32
    %c0_i32_0 = arith.constant 0 : i32
    %c0_i32_1 = arith.constant 0 : i32
    return %c0_i32, %c0_i32_0 : i32, i32
  }
  func.func @transform_8(%arg0: i32) -> (i32, i32) {
    %c0_i32 = arith.constant 0 : i32
    %c0_i32_0 = arith.constant 0 : i32
    return %arg0, %c0_i32 : i32, i32
  }
}

</mosaic_0001>

<llo_original>
// kernel: tpu_custom_call.1
$region0: #{tpu_custom_call.1}
  #allocation0 [shape = 'u32[]', space=smem, size = 0x4, offset = 0x4, fixed_abs, tag = 'smem constant byte address 0x4 - core index']
  #allocation1 [shape = 'u32[144,128]{1,0:T(1,128)}', space=vmem, size = 0x12000, scoped, tag = 'internal scratch']
  %s0 = inlined_call_operand.hbm [shape: f32[16,32], index: 0, kind: input, shape index: {}]
  %s1 = inlined_call_operand.hbm [shape: bf16[32,128], index: 1, kind: input, shape index: {}]
  %s2 = inlined_call_operand.hbm [shape: bf16[128,128], index: 2, kind: input, shape index: {}]
  %s3 = inlined_call_operand.hbm [shape: bf16[128,128], index: 3, kind: input, shape index: {}]
  %s4 = inlined_call_operand.hbm [shape: bf16[128,384], index: 4, kind: input, shape index: {}]
  %s5 = inlined_call_operand.hbm [shape: bf16[256,256], index: 5, kind: input, shape index: {}]
  %s6 = inlined_call_operand.hbm [shape: bf16[256,128], index: 6, kind: input, shape index: {}]
  %s7 = inlined_call_operand.vmem [shape: f32[8,384], index: 7, kind: input, shape index: {}]
  %s8 = inlined_call_operand.hbm [shape: bf16[16,128], index: 8, kind: output, shape index: {}]
  %s9 = sld [smem:[#allocation0]]
  $region70: #{tpu_custom_call.1} parent=0
    _
  %s11 = ssub.s32 1, %s9
  %s12 = scalar_select 0, %s11, %s9
  $region1: #{tpu_custom_call.1} parent=0
    #allocation2 [shape = 'u8[8192]{0}', space=vmem, size = 0x2000, scoped, tag = 'input window, operand 0, single buffered']
    #allocation3 [shape = 's32[1]{0}', space=sflag, size = 0x4, scoped, tag = 'scoped memory for tpu_custom_call.1']
    #allocation4 [shape = 's32[1]{0}', space=sflag, size = 0x4, scoped, tag = 'scoped memory for tpu_custom_call.1']
    #allocation5 [shape = 'u8[8192]{0}', space=vmem, size = 0x2000, scoped, tag = 'input window, operand 1, single buffered']
    #allocation6 [shape = 's32[1]{0}', space=sflag, size = 0x4, scoped, tag = 'scoped memory for tpu_custom_call.1']
    #allocation7 [shape = 'u8[32768]{0}', space=vmem, size = 0x8000, scoped, tag = 'input window, operand 2, single buffered']
    #allocation8 [shape = 'u8[32768]{0}', space=vmem, size = 0x8000, scoped, tag = 'input window, operand 3, single buffered']
    #allocation9 [shape = 's32[1]{0}', space=sflag, size = 0x4, scoped, tag = 'scoped memory for tpu_custom_call.1']
    #allocation10 [shape = 'u8[98304]{0}', space=vmem, size = 0x18000, scoped, tag = 'input window, operand 4, single buffered']
    #allocation11 [shape = 'u8[131072]{0}', space=vmem, size = 0x20000, scoped, tag = 'input window, operand 5, single buffered']
    #allocation12 [shape = 's32[1]{0}', space=sflag, size = 0x4, scoped, tag = 'scoped memory for tpu_custom_call.1']
    #allocation13 [shape = 'u8[65536]{0}', space=vmem, size = 0x10000, scoped, tag = 'input window, operand 6, single buffered']
    #allocation14 [shape = 'u8[4096]{0}', space=vmem, size = 0x1000, scoped, tag = 'output window, operand 0, single buffered']
    %13 = vsyncpa [#allocation3], 0
    %14 = vsyncpa [#allocation6], 0
    %15 = vsyncpa [#allocation9], 0
    %16 = vsyncpa [#allocation12], 0
    %17 = vsyncpa [#allocation4], 0
    // Predicated region
    $region2: #{tpu_custom_call.1} parent=1 // pred_check
      _
    $region3: #{tpu_custom_call.1} parent=1 // pred_check_branch
      %19 = sbr.rel (0) target = $region5
    $region4: #{tpu_custom_call.1} parent=1 // pred_region
      %s21 = ssub.s32 256, 256
      %22 = vsyncadd [#allocation3], %s21
      %s23 = sshll.u32 [#allocation2], 4
      %s24 = int_to_ptr.vmem [resolvable:$true] %s23
      %29 = dma.hbm_to_vmem [thread:$0]  %s0, 256, %s24, [#allocation3], 128, 128, 8
    $region5: #{tpu_custom_call.1} parent=1 // pred_fallthru
      _
    // Predicated region
    $region6: #{tpu_custom_call.1} parent=1 // pred_check
      _
    $region7: #{tpu_custom_call.1} parent=1 // pred_check_branch
      %31 = sbr.rel (0) target = $region9
    $region8: #{tpu_custom_call.1} parent=1 // pred_region
      %s33 = ssub.s32 256, 256
      %34 = vsyncadd [#allocation6], %s33
      %s35 = sshll.u32 [#allocation5], 4
      %s36 = int_to_ptr.vmem [resolvable:$true] %s35
      %41 = dma.hbm_to_vmem [thread:$0]  %s1, 256, %s36, [#allocation6], 64, 64, 4
    $region9: #{tpu_custom_call.1} parent=1 // pred_fallthru
      _
    // Predicated region
    $region10: #{tpu_custom_call.1} parent=1 // pred_check
      _
    $region11: #{tpu_custom_call.1} parent=1 // pred_check_branch
      %43 = sbr.rel (0) target = $region13
    $region12: #{tpu_custom_call.1} parent=1 // pred_region
      %s45 = ssub.s32 1024, 1024
      %46 = vsyncadd [#allocation6], %s45
      %s47 = sshll.u32 [#allocation7], 4
      %s48 = int_to_ptr.vmem [resolvable:$true] %s47
      %53 = dma.hbm_to_vmem [thread:$0]  %s2, 1024, %s48, [#allocation6], 64, 64, 4
    $region13: #{tpu_custom_call.1} parent=1 // pred_fallthru
      _
    // Predicated region
    $region14: #{tpu_custom_call.1} parent=1 // pred_check
      _
    $region15: #{tpu_custom_call.1} parent=1 // pred_check_branch
      %55 = sbr.rel (0) target = $region17
    $region16: #{tpu_custom_call.1} parent=1 // pred_region
      %s57 = ssub.s32 1024, 1024
      %58 = vsyncadd [#allocation9], %s57
      %s59 = sshll.u32 [#allocation8], 4
      %s60 = int_to_ptr.vmem [resolvable:$true] %s59
      %65 = dma.hbm_to_vmem [thread:$0]  %s3, 1024, %s60, [#allocation9], 64, 64, 4
    $region17: #{tpu_custom_call.1} parent=1 // pred_fallthru
      _
    // Predicated region
    $region18: #{tpu_custom_call.1} parent=1 // pred_check
      _
    $region19: #{tpu_custom_call.1} parent=1 // pred_check_branch
      %67 = sbr.rel (0) target = $region21
    $region20: #{tpu_custom_call.1} parent=1 // pred_region
      %s69 = ssub.s32 3072, 3072
      %70 = vsyncadd [#allocation9], %s69
      %s71 = sshll.u32 [#allocation10], 4
      %s72 = int_to_ptr.vmem [resolvable:$true] %s71
      %77 = dma.hbm_to_vmem [thread:$0]  %s4, 3072, %s72, [#allocation9], 192, 192, 12
    $region21: #{tpu_custom_call.1} parent=1 // pred_fallthru
      _
    // Predicated region
    $region22: #{tpu_custom_call.1} parent=1 // pred_check
      _
    $region23: #{tpu_custom_call.1} parent=1 // pred_check_branch
      %79 = sbr.rel (0) target = $region25
    $region24: #{tpu_custom_call.1} parent=1 // pred_region
      %s81 = ssub.s32 4096, 4096
      %82 = vsyncadd [#allocation12], %s81
      %s83 = sshll.u32 [#allocation11], 4
      %s84 = int_to_ptr.vmem [resolvable:$true] %s83
      %89 = dma.hbm_to_vmem [thread:$0]  %s5, 4096, %s84, [#allocation12], 128, 128, 8
    $region25: #{tpu_custom_call.1} parent=1 // pred_fallthru
      _
    // Predicated region
    $region26: #{tpu_custom_call.1} parent=1 // pred_check
      _
    $region27: #{tpu_custom_call.1} parent=1 // pred_check_branch
      %91 = sbr.rel (0) target = $region29
    $region28: #{tpu_custom_call.1} parent=1 // pred_region
      %s93 = ssub.s32 2048, 2048
      %94 = vsyncadd [#allocation12], %s93
      %s95 = sshll.u32 [#allocation13], 4
      %s96 = int_to_ptr.vmem [resolvable:$true] %s95
      %101 = dma.hbm_to_vmem [thread:$0]  %s6, 2048, %s96, [#allocation12], 64, 64, 4
    $region29: #{tpu_custom_call.1} parent=1 // pred_fallthru
      _
    // Predicated region
    $region30: #{tpu_custom_call.1} parent=1 // pred_check
      _
    $region31: #{tpu_custom_call.1} parent=1 // pred_check_branch
      %103 = sbr.rel (0) target = $region33
    $region32: #{tpu_custom_call.1} parent=1 // pred_region
      _
    $region33: #{tpu_custom_call.1} parent=1 // pred_fallthru
      _
    // Predicated region
    $region34: #{tpu_custom_call.1} parent=1 // pred_check
      _
    $region35: #{tpu_custom_call.1} parent=1 // pred_check_branch
      %105 = sbr.rel (0) target = $region37
    $region36: #{tpu_custom_call.1} parent=1 // pred_region
      %106 = dma.done [#allocation3], 256
    $region37: #{tpu_custom_call.1} parent=1 // pred_fallthru
      _
    // Predicated region
    $region38: #{tpu_custom_call.1} parent=1 // pred_check
      _
    $region39: #{tpu_custom_call.1} parent=1 // pred_check_branch
      %108 = sbr.rel (0) target = $region41
    $region40: #{tpu_custom_call.1} parent=1 // pred_region
      %109 = dma.done [#allocation6], 256
    $region41: #{tpu_custom_call.1} parent=1 // pred_fallthru
      _
    // Predicated region
    $region42: #{tpu_custom_call.1} parent=1 // pred_check
      _
    $region43: #{tpu_custom_call.1} parent=1 // pred_check_branch
      %111 = sbr.rel (0) target = $region45
    $region44: #{tpu_custom_call.1} parent=1 // pred_region
      %112 = dma.done [#allocation6], 1024
    $region45: #{tpu_custom_call.1} parent=1 // pred_fallthru
      _
    // Predicated region
    $region46: #{tpu_custom_call.1} parent=1 // pred_check
      _
    $region47: #{tpu_custom_call.1} parent=1 // pred_check_branch
      %114 = sbr.rel (0) target = $region49
    $region48: #{tpu_custom_call.1} parent=1 // pred_region
      %115 = dma.done [#allocation9], 1024
    $region49: #{tpu_custom_call.1} parent=1 // pred_fallthru
      _
    // Predicated region
    $region50: #{tpu_custom_call.1} parent=1 // pred_check
      _
    $region51: #{tpu_custom_call.1} parent=1 // pred_check_branch
      %117 = sbr.rel (0) target = $region53
    $region52: #{tpu_custom_call.1} parent=1 // pred_region
      %118 = dma.done [#allocation9], 3072
    $region53: #{tpu_custom_call.1} parent=1 // pred_fallthru
      _
    // Predicated region
    $region54: #{tpu_custom_call.1} parent=1 // pred_check
      _
    $region55: #{tpu_custom_call.1} parent=1 // pred_check_branch
      %120 = sbr.rel (0) target = $region57
    $region56: #{tpu_custom_call.1} parent=1 // pred_region
      %121 = dma.done [#allocation12], 4096
    $region57: #{tpu_custom_call.1} parent=1 // pred_fallthru
      _
    // Predicated region
    $region58: #{tpu_custom_call.1} parent=1 // pred_check
      _
    $region59: #{tpu_custom_call.1} parent=1 // pred_check_branch
      %123 = sbr.rel (0) target = $region61
    $region60: #{tpu_custom_call.1} parent=1 // pred_region
      %124 = dma.done [#allocation12], 2048
    $region61: #{tpu_custom_call.1} parent=1 // pred_fallthru
      _
    %v126 = vld [vmem:[%s7] sm:$0xff]
    %v127 = vld [vmem:[%s7 + $0x8] sm:$0xff]
    %v128 = vld [vmem:[%s7 + $0x10] sm:$0xff]
    %v129 = vld [vmem:[#allocation2] sm:$0xff]
    %v130 = vld [vmem:[#allocation2 + $0x8] sm:$0xff]
    %v131 = vpack.c.bf16 %v130, %v129
    %v132 = vld [vmem:[#allocation5] sm:$0xf]
    %v133 = vld [vmem:[#allocation5 + $0x4] sm:$0xf]
    %v134 = vld [vmem:[#allocation5 + $0x8] sm:$0xf]
    %v135 = vld [vmem:[#allocation5 + $0xc] sm:$0xf]
    %v136 = vlaneseq
    %v137 = vshrl.u32 %v136, 7
    %v138 = vsub.s32 0, %v137
    %v139 = vrot.slane %v126, %v138
    %v144 = vunpack.c.l.b16 %v132
    %v145 = vunpack.c.l.b16 %v133
    %v146 = vunpack.c.l.b16 %v134
    %v147 = vunpack.c.l.b16 %v135
    %v148 = vpack.c.b16 %v145, %v144
    %v149 = vpack.c.b16 %v147, %v146
    %vm152 = vcmask 261120
    %v154 = vsel %vm152, %v131, 0
    %156 = vmatprep.subr.bf16.mxu0 0
    %157 = vmatpush1.bf16.msra.mxu0 %v148
    %158 = vmatprep.subr.bf16.mxu0 0
    %159 = vmatpush1.bf16.msra.mxu0 %v149
    %160 = vmatprep.subr.bf16.mxu0 0
    %161 = vmatpush1.bf16.msra.mxu0 0
    %162 = vmatprep.subr.bf16.mxu0 0
    %163 = vmatpush1.bf16.msra.mxu0 0
    %164 = vmatprep.subr.bf16.mxu0 0
    %165 = vmatpush1.bf16.msra.mxu0 0
    %166 = vmatprep.subr.bf16.mxu0 0
    %167 = vmatpush1.bf16.msra.mxu0 0
    %168 = vmatprep.subr.bf16.mxu0 0
    %169 = vmatpush1.bf16.msra.mxu0 0
    %170 = vmatprep.subr.bf16.mxu0 0
    %171 = vmatpush1.bf16.msra.mxu0 0
    %172 = vmatprep.subr.bf16.mxu0 0
    %173 = vmatpush1.bf16.msra.mxu0 0
    %174 = vmatprep.subr.bf16.mxu0 0
    %175 = vmatpush1.bf16.msra.mxu0 0
    %176 = vmatprep.subr.bf16.mxu0 0
    %177 = vmatpush1.bf16.msra.mxu0 0
    %178 = vmatprep.subr.bf16.mxu0 0
    %179 = vmatpush1.bf16.msra.mxu0 0
    %180 = vmatprep.subr.bf16.mxu0 0
    %181 = vmatpush1.bf16.msra.mxu0 0
    %182 = vmatprep.subr.bf16.mxu0 0
    %183 = vmatpush1.bf16.msra.mxu0 0
    %184 = vmatprep.subr.bf16.mxu0 0
    %185 = vmatpush1.bf16.msra.mxu0 0
    %186 = vmatprep.subr.bf16.mxu0 0
    %187 = vmatpush1.bf16.msra.mxu0 0
    %188 = vmatprep.mubr.bf16.mxu0 0
    %189 = vmatmul.mubr.bf16.gmra.mrb[0].mxu0 %v154
    %v190 = vpop.f32.mrb[0].mxu0
    %v191 = vadd.f32 %v139, %v190
    %v192 = vpop.f32.mrb[0].mxu0
    %v193 = vpop.f32.mrb[0].mxu0
    %v194 = vadd.f32 %v139, %v193
    %v195 = vpop.f32.mrb[0].mxu0
    %196 = vdwg.mxu0
    %v197 = vmax.f32 %v191, 0.0
    %v198 = vmax.f32 %v194, 0.0
    %v199 = vpack.c.bf16 %v198, %v197
    %v200 = vld [vmem:[#allocation7] sm:$0xf]
    %v201 = vld [vmem:[#allocation7 + $0x4] sm:$0xf]
    %v202 = vld [vmem:[#allocation7 + $0x8] sm:$0xf]
    %v203 = vld [vmem:[#allocation7 + $0xc] sm:$0xf]
    %v204 = vld [vmem:[#allocation7 + $0x10] sm:$0xf]
    %v205 = vld [vmem:[#allocation7 + $0x14] sm:$0xf]
    %v206 = vld [vmem:[#allocation7 + $0x18] sm:$0xf]
    %v207 = vld [vmem:[#allocation7 + $0x1c] sm:$0xf]
    %v208 = vld [vmem:[#allocation7 + $0x20] sm:$0xf]
    %v209 = vld [vmem:[#allocation7 + $0x24] sm:$0xf]
    %v210 = vld [vmem:[#allocation7 + $0x28] sm:$0xf]
    %v211 = vld [vmem:[#allocation7 + $0x2c] sm:$0xf]
    %v212 = vld [vmem:[#allocation7 + $0x30] sm:$0xf]
    %v213 = vld [vmem:[#allocation7 + $0x34] sm:$0xf]
    %v214 = vld [vmem:[#allocation7 + $0x38] sm:$0xf]
    %v215 = vld [vmem:[#allocation7 + $0x3c] sm:$0xf]
    %v216 = vlaneseq
    %v217 = vshrl.u32 %v216, 7
    %v218 = vsub.s32 1, %v217
    %v219 = vrot.slane %v126, %v218
    %v236 = vunpack.c.l.b16 %v200
    %v237 = vunpack.c.l.b16 %v201
    %v238 = vunpack.c.l.b16 %v202
    %v239 = vunpack.c.l.b16 %v203
    %v240 = vunpack.c.l.b16 %v204
    %v241 = vunpack.c.l.b16 %v205
    %v242 = vunpack.c.l.b16 %v206
    %v243 = vunpack.c.l.b16 %v207
    %v244 = vunpack.c.l.b16 %v208
    %v245 = vunpack.c.l.b16 %v209
    %v246 = vunpack.c.l.b16 %v210
    %v247 = vunpack.c.l.b16 %v211
    %v248 = vunpack.c.l.b16 %v212
    %v249 = vunpack.c.l.b16 %v213
    %v250 = vunpack.c.l.b16 %v214
    %v251 = vunpack.c.l.b16 %v215
    %v252 = vpack.c.b16 %v237, %v236
    %v253 = vpack.c.b16 %v239, %v238
    %v254 = vpack.c.b16 %v241, %v240
    %v255 = vpack.c.b16 %v243, %v242
    %v256 = vpack.c.b16 %v245, %v244
    %v257 = vpack.c.b16 %v247, %v246
    %v258 = vpack.c.b16 %v249, %v248
    %v259 = vpack.c.b16 %v251, %v250
    %268 = vmatprep.subr.bf16.mxu0 0
    %269 = vmatpush1.bf16.msra.mxu0 %v252
    %270 = vmatprep.subr.bf16.mxu0 0
    %271 = vmatpush1.bf16.msra.mxu0 %v253
    %272 = vmatprep.subr.bf16.mxu0 0
    %273 = vmatpush1.bf16.msra.mxu0 %v254
    %274 = vmatprep.subr.bf16.mxu0 0
    %275 = vmatpush1.bf16.msra.mxu0 %v255
    %276 = vmatprep.subr.bf16.mxu0 0
    %277 = vmatpush1.bf16.msra.mxu0 %v256
    %278 = vmatprep.subr.bf16.mxu0 0
    %279 = vmatpush1.bf16.msra.mxu0 %v257
    %280 = vmatprep.subr.bf16.mxu0 0
    %281 = vmatpush1.bf16.msra.mxu0 %v258
    %282 = vmatprep.subr.bf16.mxu0 0
    %283 = vmatpush1.bf16.msra.mxu0 %v259
    %284 = vmatprep.subr.bf16.mxu0 0
    %285 = vmatpush1.bf16.msra.mxu0 0
    %286 = vmatprep.subr.bf16.mxu0 0
    %287 = vmatpush1.bf16.msra.mxu0 0
    %288 = vmatprep.subr.bf16.mxu0 0
    %289 = vmatpush1.bf16.msra.mxu0 0
    %290 = vmatprep.subr.bf16.mxu0 0
    %291 = vmatpush1.bf16.msra.mxu0 0
    %292 = vmatprep.subr.bf16.mxu0 0
    %293 = vmatpush1.bf16.msra.mxu0 0
    %294 = vmatprep.subr.bf16.mxu0 0
    %295 = vmatpush1.bf16.msra.mxu0 0
    %296 = vmatprep.subr.bf16.mxu0 0
    %297 = vmatpush1.bf16.msra.mxu0 0
    %298 = vmatprep.subr.bf16.mxu0 0
    %299 = vmatpush1.bf16.msra.mxu0 0
    %300 = vmatprep.mubr.bf16.mxu0 0
    %301 = vmatmul.mubr.bf16.gmra.mrb[0].mxu0 %v199
    %v302 = vpop.f32.mrb[0].mxu0
    %v303 = vadd.f32 %v219, %v302
    %v304 = vpop.f32.mrb[0].mxu0
    %v305 = vpop.f32.mrb[0].mxu0
    %v306 = vadd.f32 %v219, %v305
    %v307 = vpop.f32.mrb[0].mxu0
    %308 = vdwg.mxu0
    %v309 = vmax.f32 %v303, 0.0
    %v310 = vmax.f32 %v306, 0.0
    %v311 = vpack.c.bf16 %v310, %v309
    %v312 = vld [vmem:[#allocation8] sm:$0xf]
    %v313 = vld [vmem:[#allocation8 + $0x4] sm:$0xf]
    %v314 = vld [vmem:[#allocation8 + $0x8] sm:$0xf]
    %v315 = vld [vmem:[#allocation8 + $0xc] sm:$0xf]
    %v316 = vld [vmem:[#allocation8 + $0x10] sm:$0xf]
    %v317 = vld [vmem:[#allocation8 + $0x14] sm:$0xf]
    %v318 = vld [vmem:[#allocation8 + $0x18] sm:$0xf]
    %v319 = vld [vmem:[#allocation8 + $0x1c] sm:$0xf]
    %v320 = vld [vmem:[#allocation8 + $0x20] sm:$0xf]
    %v321 = vld [vmem:[#allocation8 + $0x24] sm:$0xf]
    %v322 = vld [vmem:[#allocation8 + $0x28] sm:$0xf]
    %v323 = vld [vmem:[#allocation8 + $0x2c] sm:$0xf]
    %v324 = vld [vmem:[#allocation8 + $0x30] sm:$0xf]
    %v325 = vld [vmem:[#allocation8 + $0x34] sm:$0xf]
    %v326 = vld [vmem:[#allocation8 + $0x38] sm:$0xf]
    %v327 = vld [vmem:[#allocation8 + $0x3c] sm:$0xf]
    %v328 = vlaneseq
    %v329 = vshrl.u32 %v328, 7
    %v330 = vsub.s32 2, %v329
    %v331 = vrot.slane %v126, %v330
    %v348 = vunpack.c.l.b16 %v312
    %v349 = vunpack.c.l.b16 %v313
    %v350 = vunpack.c.l.b16 %v314
    %v351 = vunpack.c.l.b16 %v315
    %v352 = vunpack.c.l.b16 %v316
    %v353 = vunpack.c.l.b16 %v317
    %v354 = vunpack.c.l.b16 %v318
    %v355 = vunpack.c.l.b16 %v319
    %v356 = vunpack.c.l.b16 %v320
    %v357 = vunpack.c.l.b16 %v321
    %v358 = vunpack.c.l.b16 %v322
    %v359 = vunpack.c.l.b16 %v323
    %v360 = vunpack.c.l.b16 %v324
    %v361 = vunpack.c.l.b16 %v325
    %v362 = vunpack.c.l.b16 %v326
    %v363 = vunpack.c.l.b16 %v327
    %v364 = vpack.c.b16 %v349, %v348
    %v365 = vpack.c.b16 %v351, %v350
    %v366 = vpack.c.b16 %v353, %v352
    %v367 = vpack.c.b16 %v355, %v354
    %v368 = vpack.c.b16 %v357, %v356
    %v369 = vpack.c.b16 %v359, %v358
    %v370 = vpack.c.b16 %v361, %v360
    %v371 = vpack.c.b16 %v363, %v362
    %380 = vmatprep.subr.bf16.mxu0 0
    %381 = vmatpush1.bf16.msra.mxu0 %v364
    %382 = vmatprep.subr.bf16.mxu0 0
    %383 = vmatpush1.bf16.msra.mxu0 %v365
    %384 = vmatprep.subr.bf16.mxu0 0
    %385 = vmatpush1.bf16.msra.mxu0 %v366
    %386 = vmatprep.subr.bf16.mxu0 0
    %387 = vmatpush1.bf16.msra.mxu0 %v367
    %388 = vmatprep.subr.bf16.mxu0 0
    %389 = vmatpush1.bf16.msra.mxu0 %v368
    %390 = vmatprep.subr.bf16.mxu0 0
    %391 = vmatpush1.bf16.msra.mxu0 %v369
    %392 = vmatprep.subr.bf16.mxu0 0
    %393 = vmatpush1.bf16.msra.mxu0 %v370
    %394 = vmatprep.subr.bf16.mxu0 0
    %395 = vmatpush1.bf16.msra.mxu0 %v371
    %396 = vmatprep.subr.bf16.mxu0 0
    %397 = vmatpush1.bf16.msra.mxu0 0
    %398 = vmatprep.subr.bf16.mxu0 0
    %399 = vmatpush1.bf16.msra.mxu0 0
    %400 = vmatprep.subr.bf16.mxu0 0
    %401 = vmatpush1.bf16.msra.mxu0 0
    %402 = vmatprep.subr.bf16.mxu0 0
    %403 = vmatpush1.bf16.msra.mxu0 0
    %404 = vmatprep.subr.bf16.mxu0 0
    %405 = vmatpush1.bf16.msra.mxu0 0
    %406 = vmatprep.subr.bf16.mxu0 0
    %407 = vmatpush1.bf16.msra.mxu0 0
    %408 = vmatprep.subr.bf16.mxu0 0
    %409 = vmatpush1.bf16.msra.mxu0 0
    %410 = vmatprep.subr.bf16.mxu0 0
    %411 = vmatpush1.bf16.msra.mxu0 0
    %412 = vmatprep.mubr.bf16.mxu0 0
    %413 = vmatmul.mubr.bf16.gmra.mrb[0].mxu0 %v311
    %v414 = vpop.f32.mrb[0].mxu0
    %v415 = vadd.f32 %v331, %v414
    %v416 = vpop.f32.mrb[0].mxu0
    %v417 = vpop.f32.mrb[0].mxu0
    %v418 = vadd.f32 %v331, %v417
    %v419 = vpop.f32.mrb[0].mxu0
    %420 = vdwg.mxu0
    %v421 = vmax.f32 %v415, 0.0
    %v422 = vmax.f32 %v418, 0.0
    %v423 = vpack.c.bf16 %v422, %v421
    %v424 = vld [vmem:[#allocation10] sm:$0xff]
    %v425 = vld [vmem:[#allocation10 + $0x8] sm:$0xf]
    %v426 = vld [vmem:[#allocation10 + $0xc] sm:$0xff]
    %v427 = vld [vmem:[#allocation10 + $0x14] sm:$0xf]
    %v428 = vld [vmem:[#allocation10 + $0x18] sm:$0xff]
    %v429 = vld [vmem:[#allocation10 + $0x20] sm:$0xf]
    %v430 = vld [vmem:[#allocation10 + $0x24] sm:$0xff]
    %v431 = vld [vmem:[#allocation10 + $0x2c] sm:$0xf]
    %v432 = vld [vmem:[#allocation10 + $0x30] sm:$0xff]
    %v433 = vld [vmem:[#allocation10 + $0x38] sm:$0xf]
    %v434 = vld [vmem:[#allocation10 + $0x3c] sm:$0xff]
    %v435 = vld [vmem:[#allocation10 + $0x44] sm:$0xf]
    %v436 = vld [vmem:[#allocation10 + $0x48] sm:$0xff]
    %v437 = vld [vmem:[#allocation10 + $0x50] sm:$0xf]
    %v438 = vld [vmem:[#allocation10 + $0x54] sm:$0xff]
    %v439 = vld [vmem:[#allocation10 + $0x5c] sm:$0xf]
    %v440 = vld [vmem:[#allocation10 + $0x60] sm:$0xff]
    %v441 = vld [vmem:[#allocation10 + $0x68] sm:$0xf]
    %v442 = vld [vmem:[#allocation10 + $0x6c] sm:$0xff]
    %v443 = vld [vmem:[#allocation10 + $0x74] sm:$0xf]
    %v444 = vld [vmem:[#allocation10 + $0x78] sm:$0xff]
    %v445 = vld [vmem:[#allocation10 + $0x80] sm:$0xf]
    %v446 = vld [vmem:[#allocation10 + $0x84] sm:$0xff]
    %v447 = vld [vmem:[#allocation10 + $0x8c] sm:$0xf]
    %v448 = vld [vmem:[#allocation10 + $0x90] sm:$0xff]
    %v449 = vld [vmem:[#allocation10 + $0x98] sm:$0xf]
    %v450 = vld [vmem:[#allocation10 + $0x9c] sm:$0xff]
    %v451 = vld [vmem:[#allocation10 + $0xa4] sm:$0xf]
    %v452 = vld [vmem:[#allocation10 + $0xa8] sm:$0xff]
    %v453 = vld [vmem:[#allocation10 + $0xb0] sm:$0xf]
    %v454 = vld [vmem:[#allocation10 + $0xb4] sm:$0xff]
    %v455 = vld [vmem:[#allocation10 + $0xbc] sm:$0xf]
    %v456 = vlaneseq
    %v457 = vshrl.u32 %v456, 7
    %v458 = vsub.s32 3, %v457
    %v459 = vrot.slane %v126, %v458
    %v460 = vlaneseq
    %v461 = vshrl.u32 %v460, 7
    %v462 = vsub.s32 3, %v461
    %v463 = vrot.slane %v127, %v462
    %v464 = vlaneseq
    %v465 = vshrl.u32 %v464, 7
    %v466 = vsub.s32 3, %v465
    %v467 = vrot.slane %v128, %v466
    %v500 = vunpack.c.l.b16 %v424
    %v501 = vunpack.c.h.b16 %v424
    %v502 = vunpack.c.l.b16 %v425
    %v503 = vunpack.c.l.b16 %v426
    %v504 = vunpack.c.h.b16 %v426
    %v505 = vunpack.c.l.b16 %v427
    %v506 = vunpack.c.l.b16 %v428
    %v507 = vunpack.c.h.b16 %v428
    %v508 = vunpack.c.l.b16 %v429
    %v509 = vunpack.c.l.b16 %v430
    %v510 = vunpack.c.h.b16 %v430
    %v511 = vunpack.c.l.b16 %v431
    %v512 = vunpack.c.l.b16 %v432
    %v513 = vunpack.c.h.b16 %v432
    %v514 = vunpack.c.l.b16 %v433
    %v515 = vunpack.c.l.b16 %v434
    %v516 = vunpack.c.h.b16 %v434
    %v517 = vunpack.c.l.b16 %v435
    %v518 = vunpack.c.l.b16 %v436
    %v519 = vunpack.c.h.b16 %v436
    %v520 = vunpack.c.l.b16 %v437
    %v521 = vunpack.c.l.b16 %v438
    %v522 = vunpack.c.h.b16 %v438
    %v523 = vunpack.c.l.b16 %v439
    %v524 = vunpack.c.l.b16 %v440
    %v525 = vunpack.c.h.b16 %v440
    %v526 = vunpack.c.l.b16 %v441
    %v527 = vunpack.c.l.b16 %v442
    %v528 = vunpack.c.h.b16 %v442
    %v529 = vunpack.c.l.b16 %v443
    %v530 = vunpack.c.l.b16 %v444
    %v531 = vunpack.c.h.b16 %v444
    %v532 = vunpack.c.l.b16 %v445
    %v533 = vunpack.c.l.b16 %v446
    %v534 = vunpack.c.h.b16 %v446
    %v535 = vunpack.c.l.b16 %v447
    %v536 = vunpack.c.l.b16 %v448
    %v537 = vunpack.c.h.b16 %v448
    %v538 = vunpack.c.l.b16 %v449
    %v539 = vunpack.c.l.b16 %v450
    %v540 = vunpack.c.h.b16 %v450
    %v541 = vunpack.c.l.b16 %v451
    %v542 = vunpack.c.l.b16 %v452
    %v543 = vunpack.c.h.b16 %v452
    %v544 = vunpack.c.l.b16 %v453
    %v545 = vunpack.c.l.b16 %v454
    %v546 = vunpack.c.h.b16 %v454
    %v547 = vunpack.c.l.b16 %v455
    %v548 = vpack.c.b16 %v503, %v500
    %v549 = vpack.c.b16 %v504, %v501
    %v550 = vpack.c.b16 %v505, %v502
    %v551 = vpack.c.b16 %v509, %v506
    %v552 = vpack.c.b16 %v510, %v507
    %v553 = vpack.c.b16 %v511, %v508
    %v554 = vpack.c.b16 %v515, %v512
    %v555 = vpack.c.b16 %v516, %v513
    %v556 = vpack.c.b16 %v517, %v514
    %v557 = vpack.c.b16 %v521, %v518
    %v558 = vpack.c.b16 %v522, %v519
    %v559 = vpack.c.b16 %v523, %v520
    %v560 = vpack.c.b16 %v527, %v524
    %v561 = vpack.c.b16 %v528, %v525
    %v562 = vpack.c.b16 %v529, %v526
    %v563 = vpack.c.b16 %v533, %v530
    %v564 = vpack.c.b16 %v534, %v531
    %v565 = vpack.c.b16 %v535, %v532
    %v566 = vpack.c.b16 %v539, %v536
    %v567 = vpack.c.b16 %v540, %v537
    %v568 = vpack.c.b16 %v541, %v538
    %v569 = vpack.c.b16 %v545, %v542
    %v570 = vpack.c.b16 %v546, %v543
    %v571 = vpack.c.b16 %v547, %v544
    %596 = vmatprep.subr.bf16.mxu0 %v549
    %597 = vmatpush1.bf16.msra.mxu0 %v548
    %598 = vmatprep.subr.bf16.mxu0 %v552
    %599 = vmatpush1.bf16.msra.mxu0 %v551
    %600 = vmatprep.subr.bf16.mxu0 %v555
    %601 = vmatpush1.bf16.msra.mxu0 %v554
    %602 = vmatprep.subr.bf16.mxu0 %v558
    %603 = vmatpush1.bf16.msra.mxu0 %v557
    %604 = vmatprep.subr.bf16.mxu0 %v561
    %605 = vmatpush1.bf16.msra.mxu0 %v560
    %606 = vmatprep.subr.bf16.mxu0 %v564
    %607 = vmatpush1.bf16.msra.mxu0 %v563
    %608 = vmatprep.subr.bf16.mxu0 %v567
    %609 = vmatpush1.bf16.msra.mxu0 %v566
    %610 = vmatprep.subr.bf16.mxu0 %v570
    %611 = vmatpush1.bf16.msra.mxu0 %v569
    %612 = vmatprep.subr.bf16.mxu0 0
    %613 = vmatpush1.bf16.msra.mxu0 0
    %614 = vmatprep.subr.bf16.mxu0 0
    %615 = vmatpush1.bf16.msra.mxu0 0
    %616 = vmatprep.subr.bf16.mxu0 0
    %617 = vmatpush1.bf16.msra.mxu0 0
    %618 = vmatprep.subr.bf16.mxu0 0
    %619 = vmatpush1.bf16.msra.mxu0 0
    %620 = vmatprep.subr.bf16.mxu0 0
    %621 = vmatpush1.bf16.msra.mxu0 0
    %622 = vmatprep.subr.bf16.mxu0 0
    %623 = vmatpush1.bf16.msra.mxu0 0
    %624 = vmatprep.subr.bf16.mxu0 0
    %625 = vmatpush1.bf16.msra.mxu0 0
    %626 = vmatprep.subr.bf16.mxu0 0
    %627 = vmatpush1.bf16.msra.mxu0 0
    %628 = vmatprep.mubr.bf16.mxu0 0
    %629 = vmatmul.mubr.bf16.gmra.mrb[0].mxu0 %v423
    %v630 = vpop.f32.mrb[0].mxu0
    %v631 = vadd.f32 %v459, %v630
    %v632 = vpop.f32.mrb[0].mxu0
    %v633 = vadd.f32 %v463, %v632
    %v634 = vpop.f32.mrb[0].mxu0
    %v635 = vadd.f32 %v459, %v634
    %v636 = vpop.f32.mrb[0].mxu0
    %v637 = vadd.f32 %v463, %v636
    %638 = vdwg.mxu0
    %639 = vmatprep.subr.bf16.mxu0 0
    %640 = vmatpush1.bf16.msra.mxu0 %v550
    %641 = vmatprep.subr.bf16.mxu0 0
    %642 = vmatpush1.bf16.msra.mxu0 %v553
    %643 = vmatprep.subr.bf16.mxu0 0
    %644 = vmatpush1.bf16.msra.mxu0 %v556
    %645 = vmatprep.subr.bf16.mxu0 0
    %646 = vmatpush1.bf16.msra.mxu0 %v559
    %647 = vmatprep.subr.bf16.mxu0 0
    %648 = vmatpush1.bf16.msra.mxu0 %v562
    %649 = vmatprep.subr.bf16.mxu0 0
    %650 = vmatpush1.bf16.msra.mxu0 %v565
    %651 = vmatprep.subr.bf16.mxu0 0
    %652 = vmatpush1.bf16.msra.mxu0 %v568
    %653 = vmatprep.subr.bf16.mxu0 0
    %654 = vmatpush1.bf16.msra.mxu0 %v571
    %655 = vmatprep.subr.bf16.mxu0 0
    %656 = vmatpush1.bf16.msra.mxu0 0
    %657 = vmatprep.subr.bf16.mxu0 0
    %658 = vmatpush1.bf16.msra.mxu0 0
    %659 = vmatprep.subr.bf16.mxu0 0
    %660 = vmatpush1.bf16.msra.mxu0 0
    %661 = vmatprep.subr.bf16.mxu0 0
    %662 = vmatpush1.bf16.msra.mxu0 0
    %663 = vmatprep.subr.bf16.mxu0 0
    %664 = vmatpush1.bf16.msra.mxu0 0
    %665 = vmatprep.subr.bf16.mxu0 0
    %666 = vmatpush1.bf16.msra.mxu0 0
    %667 = vmatprep.subr.bf16.mxu0 0
    %668 = vmatpush1.bf16.msra.mxu0 0
    %669 = vmatprep.subr.bf16.mxu0 0
    %670 = vmatpush1.bf16.msra.mxu0 0
    %671 = vmatprep.mubr.bf16.mxu0 0
    %672 = vmatmul.mubr.bf16.gmra.mrb[0].mxu0 %v423
    %v673 = vpop.f32.mrb[0].mxu0
    %v674 = vadd.f32 %v467, %v673
    %v675 = vpop.f32.mrb[0].mxu0
    %v676 = vpop.f32.mrb[0].mxu0
    %v677 = vadd.f32 %v467, %v676
    %v678 = vpop.f32.mrb[0].mxu0
    %679 = vdwg.mxu0
    %v680 = vmax.f32 %v631, 0.0
    %v681 = vmax.f32 %v633, 0.0
    %v682 = vmax.f32 %v635, 0.0
    %v683 = vmax.f32 %v637, 0.0
    %v684 = vxor.u32 %v674, 2147483648
    %v685 = vxor.u32 %v677, 2147483648
    %v686 = vmul.f32 %v684, 1.442695
    %v687 = vpow.pop %v686
    %v688 = vmul.f32 %v685, 1.442695
    %v689 = vpow.pop %v688
    %v690 = vadd.f32 %v687, 1.0
    %v691 = vadd.f32 %v689, 1.0
    %v692 = vrcp.pop %v690
    %v693 = vmul.f32 1.0, %v692
    %v694 = vrcp.pop %v691
    %v695 = vmul.f32 1.0, %v694
    %v696 = vpack.c.bf16 %v682, %v680
    %v697 = vpack.c.bf16 %v683, %v681
    %v698 = vld [vmem:[#allocation11] sm:$0xff]
    %v699 = vld [vmem:[#allocation11 + $0x8] sm:$0xff]
    %v700 = vld [vmem:[#allocation11 + $0x10] sm:$0xff]
    %v701 = vld [vmem:[#allocation11 + $0x18] sm:$0xff]
    %v702 = vld [vmem:[#allocation11 + $0x20] sm:$0xff]
    %v703 = vld [vmem:[#allocation11 + $0x28] sm:$0xff]
    %v704 = vld [vmem:[#allocation11 + $0x30] sm:$0xff]
    %v705 = vld [vmem:[#allocation11 + $0x38] sm:$0xff]
    %v706 = vld [vmem:[#allocation11 + $0x40] sm:$0xff]
    %v707 = vld [vmem:[#allocation11 + $0x48] sm:$0xff]
    %v708 = vld [vmem:[#allocation11 + $0x50] sm:$0xff]
    %v709 = vld [vmem:[#allocation11 + $0x58] sm:$0xff]
    %v710 = vld [vmem:[#allocation11 + $0x60] sm:$0xff]
    %v711 = vld [vmem:[#allocation11 + $0x68] sm:$0xff]
    %v712 = vld [vmem:[#allocation11 + $0x70] sm:$0xff]
    %v713 = vld [vmem:[#allocation11 + $0x78] sm:$0xff]
    %v714 = vld [vmem:[#allocation11 + $0x80] sm:$0xff]
    %v715 = vld [vmem:[#allocation11 + $0x88] sm:$0xff]
    %v716 = vld [vmem:[#allocation11 + $0x90] sm:$0xff]
    %v717 = vld [vmem:[#allocation11 + $0x98] sm:$0xff]
    %v718 = vld [vmem:[#allocation11 + $0xa0] sm:$0xff]
    %v719 = vld [vmem:[#allocation11 + $0xa8] sm:$0xff]
    %v720 = vld [vmem:[#allocation11 + $0xb0] sm:$0xff]
    %v721 = vld [vmem:[#allocation11 + $0xb8] sm:$0xff]
    %v722 = vld [vmem:[#allocation11 + $0xc0] sm:$0xff]
    %v723 = vld [vmem:[#allocation11 + $0xc8] sm:$0xff]
    %v724 = vld [vmem:[#allocation11 + $0xd0] sm:$0xff]
    %v725 = vld [vmem:[#allocation11 + $0xd8] sm:$0xff]
    %v726 = vld [vmem:[#allocation11 + $0xe0] sm:$0xff]
    %v727 = vld [vmem:[#allocation11 + $0xe8] sm:$0xff]
    %v728 = vld [vmem:[#allocation11 + $0xf0] sm:$0xff]
    %v729 = vld [vmem:[#allocation11 + $0xf8] sm:$0xff]
    %v730 = vlaneseq
    %v731 = vshrl.u32 %v730, 7
    %v732 = vsub.s32 4, %v731
    %v733 = vrot.slane %v126, %v732
    %v734 = vlaneseq
    %v735 = vshrl.u32 %v734, 7
    %v736 = vsub.s32 4, %v735
    %v737 = vrot.slane %v127, %v736
    %v770 = vunpack.c.l.b16 %v698
    %v771 = vunpack.c.h.b16 %v698
    %v772 = vunpack.c.l.b16 %v699
    %v773 = vunpack.c.h.b16 %v699
    %v774 = vunpack.c.l.b16 %v700
    %v775 = vunpack.c.h.b16 %v700
    %v776 = vunpack.c.l.b16 %v701
    %v777 = vunpack.c.h.b16 %v701
    %v778 = vunpack.c.l.b16 %v702
    %v779 = vunpack.c.h.b16 %v702
    %v780 = vunpack.c.l.b16 %v703
    %v781 = vunpack.c.h.b16 %v703
    %v782 = vunpack.c.l.b16 %v704
    %v783 = vunpack.c.h.b16 %v704
    %v784 = vunpack.c.l.b16 %v705
    %v785 = vunpack.c.h.b16 %v705
    %v786 = vunpack.c.l.b16 %v706
    %v787 = vunpack.c.h.b16 %v706
    %v788 = vunpack.c.l.b16 %v707
    %v789 = vunpack.c.h.b16 %v707
    %v790 = vunpack.c.l.b16 %v708
    %v791 = vunpack.c.h.b16 %v708
    %v792 = vunpack.c.l.b16 %v709
    %v793 = vunpack.c.h.b16 %v709
    %v794 = vunpack.c.l.b16 %v710
    %v795 = vunpack.c.h.b16 %v710
    %v796 = vunpack.c.l.b16 %v711
    %v797 = vunpack.c.h.b16 %v711
    %v798 = vunpack.c.l.b16 %v712
    %v799 = vunpack.c.h.b16 %v712
    %v800 = vunpack.c.l.b16 %v713
    %v801 = vunpack.c.h.b16 %v713
    %v802 = vunpack.c.l.b16 %v714
    %v803 = vunpack.c.h.b16 %v714
    %v804 = vunpack.c.l.b16 %v715
    %v805 = vunpack.c.h.b16 %v715
    %v806 = vunpack.c.l.b16 %v716
    %v807 = vunpack.c.h.b16 %v716
    %v808 = vunpack.c.l.b16 %v717
    %v809 = vunpack.c.h.b16 %v717
    %v810 = vunpack.c.l.b16 %v718
    %v811 = vunpack.c.h.b16 %v718
    %v812 = vunpack.c.l.b16 %v719
    %v813 = vunpack.c.h.b16 %v719
    %v814 = vunpack.c.l.b16 %v720
    %v815 = vunpack.c.h.b16 %v720
    %v816 = vunpack.c.l.b16 %v721
    %v817 = vunpack.c.h.b16 %v721
    %v818 = vunpack.c.l.b16 %v722
    %v819 = vunpack.c.h.b16 %v722
    %v820 = vunpack.c.l.b16 %v723
    %v821 = vunpack.c.h.b16 %v723
    %v822 = vunpack.c.l.b16 %v724
    %v823 = vunpack.c.h.b16 %v724
    %v824 = vunpack.c.l.b16 %v725
    %v825 = vunpack.c.h.b16 %v725
    %v826 = vunpack.c.l.b16 %v726
    %v827 = vunpack.c.h.b16 %v726
    %v828 = vunpack.c.l.b16 %v727
    %v829 = vunpack.c.h.b16 %v727
    %v830 = vunpack.c.l.b16 %v728
    %v831 = vunpack.c.h.b16 %v728
    %v832 = vunpack.c.l.b16 %v729
    %v833 = vunpack.c.h.b16 %v729
    %v834 = vpack.c.b16 %v772, %v770
    %v835 = vpack.c.b16 %v773, %v771
    %v836 = vpack.c.b16 %v776, %v774
    %v837 = vpack.c.b16 %v777, %v775
    %v838 = vpack.c.b16 %v780, %v778
    %v839 = vpack.c.b16 %v781, %v779
    %v840 = vpack.c.b16 %v784, %v782
    %v841 = vpack.c.b16 %v785, %v783
    %v842 = vpack.c.b16 %v788, %v786
    %v843 = vpack.c.b16 %v789, %v787
    %v844 = vpack.c.b16 %v792, %v790
    %v845 = vpack.c.b16 %v793, %v791
    %v846 = vpack.c.b16 %v796, %v794
    %v847 = vpack.c.b16 %v797, %v795
    %v848 = vpack.c.b16 %v800, %v798
    %v849 = vpack.c.b16 %v801, %v799
    %v850 = vpack.c.b16 %v804, %v802
    %v851 = vpack.c.b16 %v805, %v803
    %v852 = vpack.c.b16 %v808, %v806
    %v853 = vpack.c.b16 %v809, %v807
    %v854 = vpack.c.b16 %v812, %v810
    %v855 = vpack.c.b16 %v813, %v811
    %v856 = vpack.c.b16 %v816, %v814
    %v857 = vpack.c.b16 %v817, %v815
    %v858 = vpack.c.b16 %v820, %v818
    %v859 = vpack.c.b16 %v821, %v819
    %v860 = vpack.c.b16 %v824, %v822
    %v861 = vpack.c.b16 %v825, %v823
    %v862 = vpack.c.b16 %v828, %v826
    %v863 = vpack.c.b16 %v829, %v827
    %v864 = vpack.c.b16 %v832, %v830
    %v865 = vpack.c.b16 %v833, %v831
    %898 = vmatprep.subr.bf16.mxu0 %v835
    %899 = vmatpush1.bf16.msra.mxu0 %v834
    %900 = vmatprep.subr.bf16.mxu0 %v837
    %901 = vmatpush1.bf16.msra.mxu0 %v836
    %902 = vmatprep.subr.bf16.mxu0 %v839
    %903 = vmatpush1.bf16.msra.mxu0 %v838
    %904 = vmatprep.subr.bf16.mxu0 %v841
    %905 = vmatpush1.bf16.msra.mxu0 %v840
    %906 = vmatprep.subr.bf16.mxu0 %v843
    %907 = vmatpush1.bf16.msra.mxu0 %v842
    %908 = vmatprep.subr.bf16.mxu0 %v845
    %909 = vmatpush1.bf16.msra.mxu0 %v844
    %910 = vmatprep.subr.bf16.mxu0 %v847
    %911 = vmatpush1.bf16.msra.mxu0 %v846
    %912 = vmatprep.subr.bf16.mxu0 %v849
    %913 = vmatpush1.bf16.msra.mxu0 %v848
    %914 = vmatprep.subr.bf16.mxu0 %v851
    %915 = vmatpush1.bf16.msra.mxu0 %v850
    %916 = vmatprep.subr.bf16.mxu0 %v853
    %917 = vmatpush1.bf16.msra.mxu0 %v852
    %918 = vmatprep.subr.bf16.mxu0 %v855
    %919 = vmatpush1.bf16.msra.mxu0 %v854
    %920 = vmatprep.subr.bf16.mxu0 %v857
    %921 = vmatpush1.bf16.msra.mxu0 %v856
    %922 = vmatprep.subr.bf16.mxu0 %v859
    %923 = vmatpush1.bf16.msra.mxu0 %v858
    %924 = vmatprep.subr.bf16.mxu0 %v861
    %925 = vmatpush1.bf16.msra.mxu0 %v860
    %926 = vmatprep.subr.bf16.mxu0 %v863
    %927 = vmatpush1.bf16.msra.mxu0 %v862
    %928 = vmatprep.subr.bf16.mxu0 %v865
    %929 = vmatpush1.bf16.msra.mxu0 %v864
    %930 = vmatprep.mubr.bf16.mxu0 %v697
    %931 = vmatmul.mubr.bf16.gmra.mrb[0].mxu0 %v696
    %v932 = vpop.f32.mrb[0].mxu0
    %v933 = vadd.f32 %v733, %v932
    %v934 = vpop.f32.mrb[0].mxu0
    %v935 = vadd.f32 %v737, %v934
    %v936 = vpop.f32.mrb[0].mxu0
    %v937 = vadd.f32 %v733, %v936
    %v938 = vpop.f32.mrb[0].mxu0
    %v939 = vadd.f32 %v737, %v938
    %940 = vdwg.mxu0
    %v941 = vmax.f32 %v933, 0.0
    %v942 = vmax.f32 %v935, 0.0
    %v943 = vmax.f32 %v937, 0.0
    %v944 = vmax.f32 %v939, 0.0
    %v945 = vpack.c.bf16 %v943, %v941
    %v946 = vpack.c.bf16 %v944, %v942
    %v947 = vld [vmem:[#allocation13] sm:$0xf]
    %v948 = vld [vmem:[#allocation13 + $0x4] sm:$0xf]
    %v949 = vld [vmem:[#allocation13 + $0x8] sm:$0xf]
    %v950 = vld [vmem:[#allocation13 + $0xc] sm:$0xf]
    %v951 = vld [vmem:[#allocation13 + $0x10] sm:$0xf]
    %v952 = vld [vmem:[#allocation13 + $0x14] sm:$0xf]
    %v953 = vld [vmem:[#allocation13 + $0x18] sm:$0xf]
    %v954 = vld [vmem:[#allocation13 + $0x1c] sm:$0xf]
    %v955 = vld [vmem:[#allocation13 + $0x20] sm:$0xf]
    %v956 = vld [vmem:[#allocation13 + $0x24] sm:$0xf]
    %v957 = vld [vmem:[#allocation13 + $0x28] sm:$0xf]
    %v958 = vld [vmem:[#allocation13 + $0x2c] sm:$0xf]
    %v959 = vld [vmem:[#allocation13 + $0x30] sm:$0xf]
    %v960 = vld [vmem:[#allocation13 + $0x34] sm:$0xf]
    %v961 = vld [vmem:[#allocation13 + $0x38] sm:$0xf]
    %v962 = vld [vmem:[#allocation13 + $0x3c] sm:$0xf]
    %v963 = vld [vmem:[#allocation13 + $0x40] sm:$0xf]
    %v964 = vld [vmem:[#allocation13 + $0x44] sm:$0xf]
    %v965 = vld [vmem:[#allocation13 + $0x48] sm:$0xf]
    %v966 = vld [vmem:[#allocation13 + $0x4c] sm:$0xf]
    %v967 = vld [vmem:[#allocation13 + $0x50] sm:$0xf]
    %v968 = vld [vmem:[#allocation13 + $0x54] sm:$0xf]
    %v969 = vld [vmem:[#allocation13 + $0x58] sm:$0xf]
    %v970 = vld [vmem:[#allocation13 + $0x5c] sm:$0xf]
    %v971 = vld [vmem:[#allocation13 + $0x60] sm:$0xf]
    %v972 = vld [vmem:[#allocation13 + $0x64] sm:$0xf]
    %v973 = vld [vmem:[#allocation13 + $0x68] sm:$0xf]
    %v974 = vld [vmem:[#allocation13 + $0x6c] sm:$0xf]
    %v975 = vld [vmem:[#allocation13 + $0x70] sm:$0xf]
    %v976 = vld [vmem:[#allocation13 + $0x74] sm:$0xf]
    %v977 = vld [vmem:[#allocation13 + $0x78] sm:$0xf]
    %v978 = vld [vmem:[#allocation13 + $0x7c] sm:$0xf]
    %v979 = vlaneseq
    %v980 = vshrl.u32 %v979, 7
    %v981 = vsub.s32 5, %v980
    %v982 = vrot.slane %v126, %v981
    %v1015 = vunpack.c.l.b16 %v947
    %v1016 = vunpack.c.l.b16 %v948
    %v1017 = vunpack.c.l.b16 %v949
    %v1018 = vunpack.c.l.b16 %v950
    %v1019 = vunpack.c.l.b16 %v951
    %v1020 = vunpack.c.l.b16 %v952
    %v1021 = vunpack.c.l.b16 %v953
    %v1022 = vunpack.c.l.b16 %v954
    %v1023 = vunpack.c.l.b16 %v955
    %v1024 = vunpack.c.l.b16 %v956
    %v1025 = vunpack.c.l.b16 %v957
    %v1026 = vunpack.c.l.b16 %v958
    %v1027 = vunpack.c.l.b16 %v959
    %v1028 = vunpack.c.l.b16 %v960
    %v1029 = vunpack.c.l.b16 %v961
    %v1030 = vunpack.c.l.b16 %v962
    %v1031 = vunpack.c.l.b16 %v963
    %v1032 = vunpack.c.l.b16 %v964
    %v1033 = vunpack.c.l.b16 %v965
    %v1034 = vunpack.c.l.b16 %v966
    %v1035 = vunpack.c.l.b16 %v967
    %v1036 = vunpack.c.l.b16 %v968
    %v1037 = vunpack.c.l.b16 %v969
    %v1038 = vunpack.c.l.b16 %v970
    %v1039 = vunpack.c.l.b16 %v971
    %v1040 = vunpack.c.l.b16 %v972
    %v1041 = vunpack.c.l.b16 %v973
    %v1042 = vunpack.c.l.b16 %v974
    %v1043 = vunpack.c.l.b16 %v975
    %v1044 = vunpack.c.l.b16 %v976
    %v1045 = vunpack.c.l.b16 %v977
    %v1046 = vunpack.c.l.b16 %v978
    %v1047 = vpack.c.b16 %v1016, %v1015
    %v1048 = vpack.c.b16 %v1018, %v1017
    %v1049 = vpack.c.b16 %v1020, %v1019
    %v1050 = vpack.c.b16 %v1022, %v1021
    %v1051 = vpack.c.b16 %v1024, %v1023
    %v1052 = vpack.c.b16 %v1026, %v1025
    %v1053 = vpack.c.b16 %v1028, %v1027
    %v1054 = vpack.c.b16 %v1030, %v1029
    %v1055 = vpack.c.b16 %v1032, %v1031
    %v1056 = vpack.c.b16 %v1034, %v1033
    %v1057 = vpack.c.b16 %v1036, %v1035
    %v1058 = vpack.c.b16 %v1038, %v1037
    %v1059 = vpack.c.b16 %v1040, %v1039
    %v1060 = vpack.c.b16 %v1042, %v1041
    %v1061 = vpack.c.b16 %v1044, %v1043
    %v1062 = vpack.c.b16 %v1046, %v1045
    %1079 = vmatprep.subr.bf16.mxu0 0
    %1080 = vmatpush1.bf16.msra.mxu0 %v1047
    %1081 = vmatprep.subr.bf16.mxu0 0
    %1082 = vmatpush1.bf16.msra.mxu0 %v1048
    %1083 = vmatprep.subr.bf16.mxu0 0
    %1084 = vmatpush1.bf16.msra.mxu0 %v1049
    %1085 = vmatprep.subr.bf16.mxu0 0
    %1086 = vmatpush1.bf16.msra.mxu0 %v1050
    %1087 = vmatprep.subr.bf16.mxu0 0
    %1088 = vmatpush1.bf16.msra.mxu0 %v1051
    %1089 = vmatprep.subr.bf16.mxu0 0
    %1090 = vmatpush1.bf16.msra.mxu0 %v1052
    %1091 = vmatprep.subr.bf16.mxu0 0
    %1092 = vmatpush1.bf16.msra.mxu0 %v1053
    %1093 = vmatprep.subr.bf16.mxu0 0
    %1094 = vmatpush1.bf16.msra.mxu0 %v1054
    %1095 = vmatprep.subr.bf16.mxu0 0
    %1096 = vmatpush1.bf16.msra.mxu0 %v1055
    %1097 = vmatprep.subr.bf16.mxu0 0
    %1098 = vmatpush1.bf16.msra.mxu0 %v1056
    %1099 = vmatprep.subr.bf16.mxu0 0
    %1100 = vmatpush1.bf16.msra.mxu0 %v1057
    %1101 = vmatprep.subr.bf16.mxu0 0
    %1102 = vmatpush1.bf16.msra.mxu0 %v1058
    %1103 = vmatprep.subr.bf16.mxu0 0
    %1104 = vmatpush1.bf16.msra.mxu0 %v1059
    %1105 = vmatprep.subr.bf16.mxu0 0
    %1106 = vmatpush1.bf16.msra.mxu0 %v1060
    %1107 = vmatprep.subr.bf16.mxu0 0
    %1108 = vmatpush1.bf16.msra.mxu0 %v1061
    %1109 = vmatprep.subr.bf16.mxu0 0
    %1110 = vmatpush1.bf16.msra.mxu0 %v1062
    %1111 = vmatprep.mubr.bf16.mxu0 %v946
    %1112 = vmatmul.mubr.bf16.gmra.mrb[0].mxu0 %v945
    %v1113 = vpop.f32.mrb[0].mxu0
    %v1114 = vadd.f32 %v982, %v1113
    %v1115 = vpop.f32.mrb[0].mxu0
    %v1116 = vpop.f32.mrb[0].mxu0
    %v1117 = vadd.f32 %v982, %v1116
    %v1118 = vpop.f32.mrb[0].mxu0
    %1119 = vdwg.mxu0
    %v1120 = vlaneseq
    %v1121 = vand.u32 %v1120, 127
    %vm1122 = vcmp.eq.s32.totalorder %v1121, 2
    %v1123 = vsel %vm1122, %v693, %v1114
    %v1124 = vsel %vm1122, %v695, %v1117
    %v1125 = vpack.c.bf16 %v1124, %v1123
    %v1127 = vunpack.c.l.b16 %v1125
    %v1128 = vunpack.c.h.b16 %v1125
    %v1129 = vpack.c.b16 %v1127, %v1127
    %v1130 = vpack.c.b16 %v1128, %v1128
    %1133 = vst [vmem:[#allocation14] sm:$0xf] %v1129
    %1134 = vst [vmem:[#allocation14 + $0x4] sm:$0xf] %v1130
    // Predicated region
    $region62: #{tpu_custom_call.1} parent=1 // pred_check
      _
    $region63: #{tpu_custom_call.1} parent=1 // pred_check_branch
      %1136 = sbr.rel (0) target = $region65
    $region64: #{tpu_custom_call.1} parent=1 // pred_region
      %s1138 = ssub.s32 128, 128
      %1139 = vsyncadd [#allocation4], %s1138
      %s1140 = sshll.u32 [#allocation14], 4
      %s1141 = int_to_ptr.vmem [resolvable:$true] %s1140
      %1146 = dma.vmem_to_hbm [thread:$0]  %s1141, 128, %s8, [#allocation4], 64, 64, 4
    $region65: #{tpu_custom_call.1} parent=1 // pred_fallthru
      _
    // Predicated region
    $region66: #{tpu_custom_call.1} parent=1 // pred_check
      _
    $region67: #{tpu_custom_call.1} parent=1 // pred_check_branch
      %1148 = sbr.rel (0) target = $region69
    $region68: #{tpu_custom_call.1} parent=1 // pred_region
      %1149 = dma.done [#allocation4], 128
    $region69: #{tpu_custom_call.1} parent=1 // pred_fallthru
      _
    %1150 = vsyncpa [#allocation3], 1
    %1151 = vsyncpa [#allocation6], 1
    %1152 = vsyncpa [#allocation9], 1
    %1153 = vsyncpa [#allocation12], 1
    %1154 = vsyncpa [#allocation4], 1

</llo_original>
